<compile_context>
chip_gen: v7x
topology: tpu7x:2x2x1
jax: 0.10.0
libtpu: 0.0.40
codegen_flags: <defaults>
</compile_context>

<pallas_src>
import functools
import math

import jax
import jax.numpy as jnp
import numpy as np
from jax.experimental import pallas as pl
from jax.experimental.pallas import tpu as pltpu

EMBED = 32                # embed_size
HEADS = 4
HEAD_DIM = EMBED // HEADS
PACK = 4                  # tokens packed per 128-lane row
LANES = PACK * EMBED      # 128
LN_EPS = 1e-5

# Indices into the stacked (6, 128, 128) bf16 constant-matrix operand.
_WQ, _WK, _WV, _WO, _MAVG, _M8 = range(6)
# Rows of the stacked (16, 128) f32 vector operand (rows 10..15 are zero pad).
_BQ, _BK, _BV, _BO, _GQ, _GK, _GV, _BETAQ, _BETAK, _BETAV = range(10)


# ---------------------------------------------------------------------------
# Kernel
# ---------------------------------------------------------------------------
def _head_roll(x, r, no_wrap_mask):
    """Segmented lane roll: within each token's 32-lane segment move head
    (h + r) % HEADS into head h's 8 lanes.  Two full-width XLU rolls combined
    with a static lane%32 mask (pltpu.roll == jnp.roll semantics)."""
    if r == 0:
        return x
    shift = HEAD_DIM * r
    within = pltpu.roll(x, LANES - shift, axis=1)   # lane i <- lane (i + shift) % LANES
    wrapped = pltpu.roll(x, EMBED - shift, axis=1)  # lane i <- lane (i + shift - 32) % LANES
    return jnp.where(no_wrap_mask, within, wrapped)


def mha_kernel(q_ref, k_ref, v_ref, w_ref, vec_ref, out_ref):
    m_avg = w_ref[_MAVG]   # bf16, block-diag 1/32: per-token mean broadcast
    m8 = w_ref[_M8]        # bf16, block-diag 1/sqrt(head_dim): per-head d-sum + scale

    def row(i):            # (1, 128) f32 parameter row, broadcast over token tile
        return vec_ref[i:i + 1, :]

    def proj_ln(x_ref, w_idx, b_idx, g_idx, beta_idx):
        # Mean-centering is pre-folded into W/b, so the matmul output is already
        # the centered activation; only the variance matmul remains.
        c = jnp.dot(x_ref[...], w_ref[w_idx],
                    preferred_element_type=jnp.float32) + row(b_idx)
        var = jnp.dot((c * c).astype(jnp.bfloat16), m_avg,
                      preferred_element_type=jnp.float32)
        return c * jax.lax.rsqrt(var + LN_EPS) * row(g_idx) + row(beta_idx)

    q = proj_ln(q_ref, _WQ, _BQ, _GQ, _BETAQ)
    k = proj_ln(k_ref, _WK, _BK, _GK, _BETAK)
    v = proj_ln(v_ref, _WV, _BV, _GV, _BETAV)

    # Hoisted lane-within-token masks for the segmented rolls (r = 1..3).
    lane_in_tok = jax.lax.broadcasted_iota(jnp.int32, q.shape, 1) % EMBED
    no_wrap = [None] + [lane_in_tok < (EMBED - HEAD_DIM * r) for r in range(1, HEADS)]

    # --- pass 1: scores per head rotation (only s_r kept live) ---
    # s_r lane (token, head h, d) = scores[token, h, (h+r)%HEADS]  (bcast over d)
    s_list = []
    for r in range(HEADS):                          # static, unrolled
        k_r = _head_roll(k, r, no_wrap[r] if r else None)
        s_r = jnp.dot((q * k_r).astype(jnp.bfloat16), m8,
                      preferred_element_type=jnp.float32)
        s_list.append(s_r)
    m = functools.reduce(jnp.maximum, s_list)

    # --- pass 2: softmax-weighted accumulation, v re-rolled on the XLU ---
    e0 = jnp.exp(s_list[0] - m)
    denom = e0
    acc = e0 * v
    for r in range(1, HEADS):
        e_r = jnp.exp(s_list[r] - m)
        v_r = _head_roll(v, r, no_wrap[r])
        denom = denom + e_r
        acc = acc + e_r * v_r
    attn = acc * pl.reciprocal(denom, approx=True)

    # --- output projection ---
    out = jnp.dot(attn.astype(jnp.bfloat16), w_ref[_WO],
                  preferred_element_type=jnp.float32) + row(_BO)
    out_ref[...] = out


# ---------------------------------------------------------------------------
# Wrapper
# ---------------------------------------------------------------------------
def _round_up(x, m):
    return ((x + m - 1) // m) * m


def multihead_attention(packed_params, query, keys, values, *, tm=4096):
    """query/keys/values: (B, S, E) float32. Returns (B*S, E) float32."""
    w_stack, vec_stack = packed_params
    q2 = query.reshape(-1, EMBED)
    k2 = keys.reshape(-1, EMBED)
    v2 = values.reshape(-1, EMBED)
    T = q2.shape[0]

    # Pack PACK tokens per 128-lane row; pad at most PACK-1 tokens (tiny).
    pad_tok = (-T) % PACK
    if pad_tok:
        pad = ((0, pad_tok), (0, 0))
        q2, k2, v2 = jnp.pad(q2, pad), jnp.pad(k2, pad), jnp.pad(v2, pad)
    rows = (T + pad_tok) // PACK

    def pack(x):  # lane-dense packed layout + bf16 for the MXU
        return x.reshape(rows, LANES).astype(jnp.bfloat16)

    qp, kp, vp = pack(q2), pack(k2), pack(v2)

    # Tile-size selection: big tiles to amortize per-step overhead, but capped
    # so the grid has >=2 steps (v7x has 2 TensorCores); no full-array padding
    # is done for ragged row counts -- the last block is clipped by Pallas.
    max_bm = max(tm // PACK, 8)
    if rows <= 8:
        bm = rows                                   # single full-array block
    else:
        bm = min(_round_up(rows, 8), max_bm, _round_up(pl.cdiv(rows, 2), 8))
    grid = pl.cdiv(rows, bm)

    row_spec = pl.BlockSpec((bm, LANES), lambda i: (i, 0))

    out = pl.pallas_call(
        mha_kernel,
        out_shape=jax.ShapeDtypeStruct((rows, LANES), jnp.float32),
        grid_spec=pltpu.PrefetchScalarGridSpec(
            num_scalar_prefetch=0,
            grid=(grid,),
            in_specs=[
                row_spec, row_spec, row_spec,                           # q, k, v tiles
                pl.BlockSpec((6, LANES, LANES), lambda i: (0, 0, 0)),   # bf16 weight stack
                pl.BlockSpec((16, LANES), lambda i: (0, 0)),            # f32 bias/ln stack
            ],
            out_specs=row_spec,
        ),
        compiler_params=pltpu.CompilerParams(
            dimension_semantics=("parallel",),
            vmem_limit_bytes=32 * 1024 * 1024,
        ),
    )(qp, kp, vp, w_stack, vec_stack)

    return out.reshape(rows * PACK, EMBED)[:T]


# ---------------------------------------------------------------------------
# Parameter construction / packing
# ---------------------------------------------------------------------------
def init_params(key):
    """PyTorch Linear default init: U(-1/sqrt(in), 1/sqrt(in)); LN gamma=1, beta=0."""
    E = EMBED
    bound = 1.0 / math.sqrt(E)
    ks = jax.random.split(key, 8)

    def lin(kw, kb):
        w = jax.random.uniform(kw, (E, E), jnp.float32, -bound, bound)  # (out, in)
        b = jax.random.uniform(kb, (E,), jnp.float32, -bound, bound)
        return w.T, b  # pre-transpose: y = x @ w_t

    wq_t, bq = lin(ks[0], ks[1])
    wk_t, bk = lin(ks[2], ks[3])
    wv_t, bv = lin(ks[4], ks[5])
    wo_t, bo = lin(ks[6], ks[7])
    ones = jnp.ones((E,), jnp.float32)
    zeros = jnp.zeros((E,), jnp.float32)
    return dict(
        wq_t=wq_t, bq=bq, gq=ones, betaq=zeros,
        wk_t=wk_t, bk=bk, gk=ones, betak=zeros,
        wv_t=wv_t, bv=bv, gv=ones, betav=zeros,
        wo_t=wo_t, bo=bo,
    )


def _block_diag4(w32):
    """(32,32) -> (128,128) with PACK copies on the diagonal."""
    return jnp.kron(jnp.eye(PACK, dtype=jnp.float32), w32.astype(jnp.float32))


def _avg_matrix():
    """Block-diag (128,128): each 32x32 block = 1/32 (per-token mean broadcast)."""
    return np.kron(np.eye(PACK, dtype=np.float32),
                   np.full((EMBED, EMBED), 1.0 / EMBED, np.float32))


def _dsum_matrix():
    """Block-diag (128,128): 8x8 blocks of 1/sqrt(head_dim). Sums the head_dim
    lanes of q*k_r per (token, head), broadcasts the score over those lanes and
    applies the 1/sqrt(d) attention scale in the same MXU matmul."""
    n_blocks = LANES // HEAD_DIM
    return np.kron(np.eye(n_blocks, dtype=np.float32),
                   np.full((HEAD_DIM, HEAD_DIM), 1.0 / math.sqrt(HEAD_DIM), np.float32))


def pack_params(p):
    """Build the stacked constant operands consumed by the kernel.

    LayerNorm mean-centering is folded into the q/k/v projection weights and
    biases here (W' = W_t (I - J/E), b' = b - mean(b)), so the kernel only
    computes the variance matmul.
    """
    def cen_w(w_t):
        return w_t - jnp.mean(w_t, axis=1, keepdims=True)

    def cen_b(b):
        return b - jnp.mean(b)

    w_stack = jnp.stack([
        _block_diag4(cen_w(p["wq_t"])), _block_diag4(cen_w(p["wk_t"])),
        _block_diag4(cen_w(p["wv_t"])), _block_diag4(p["wo_t"]),
        jnp.asarray(_avg_matrix()), jnp.asarray(_dsum_matrix()),
    ]).astype(jnp.bfloat16)                                   # bf16 MXU operands

    def tile(x):
        return jnp.tile(x.reshape(1, EMBED), (1, PACK)).reshape(LANES)

    vec_rows = [cen_b(p["bq"]), cen_b(p["bk"]), cen_b(p["bv"]), p["bo"],
                p["gq"], p["gk"], p["gv"],
                p["betaq"], p["betak"], p["betav"]]
    vec_stack = jnp.stack([tile(x) for x in vec_rows] +
                          [jnp.zeros((LANES,), jnp.float32)] * 6)  # f32 VPU operands
    return w_stack, vec_stack


# ---------------------------------------------------------------------------
# Pure-JAX reference (f32, dropout = identity)
# ---------------------------------------------------------------------------
def ref_forward(params, query, keys, values):
    E, H, D = EMBED, HEADS, HEAD_DIM

    def ln(x, g, b):
        mean = jnp.mean(x, axis=-1, keepdims=True)
        var = jnp.mean((x - mean) ** 2, axis=-1, keepdims=True)
        return (x - mean) * jax.lax.rsqrt(var + LN_EPS) * g + b

    q = ln(query.reshape(-1, E) @ params["wq_t"] + params["bq"],
           params["gq"], params["betaq"]).reshape(-1, H, D)
    k = ln(keys.reshape(-1, E) @ params["wk_t"] + params["bk"],
           params["gk"], params["betak"]).reshape(-1, H, D)
    v = ln(values.reshape(-1, E) @ params["wv_t"] + params["bv"],
           params["gv"], params["betav"]).reshape(-1, H, D)
    x = jnp.einsum("thd,tgd->thg", q, k) / math.sqrt(D)
    x = jax.nn.softmax(x, axis=-1)
    x = jnp.einsum("thg,tgd->thd", x, v).reshape(-1, E)
    return x @ params["wo_t"] + params["bo"]


if __name__ == "__main__":
    key = jax.random.PRNGKey(0)
    kp, kq, kk, kv = jax.random.split(key, 4)

    B, S = 2, 8
    params = init_params(kp)
    packed = pack_params(params)
    query = jax.random.normal(kq, (B, S, EMBED), jnp.float32)
    keys = jax.random.normal(kk, (B, S, EMBED), jnp.float32)
    values = jax.random.normal(kv, (B, S, EMBED), jnp.float32)

    out = jax.block_until_ready(multihead_attention(packed, query, keys, values))
    ref = jax.block_until_ready(ref_forward(params, query, keys, values))

    # bf16 MXU operands + approx softmax reciprocal vs exact f32 reference ->
    # relaxed tolerance (structural errors would be O(1), far above this).
    out_np, ref_np = np.asarray(out), np.asarray(ref)
    if not np.allclose(out_np, ref_np, atol=8e-2, rtol=8e-2):
        err = float(np.max(np.abs(out_np - ref_np)))
        raise AssertionError(f"Pallas output does not match JAX reference (max err {err})")

    print("KERNEL_OK")
</pallas_src>

<mosaic_0001>
module attributes {stable_mosaic.version = 11 : i64} {
  func.func @mha_kernel(%arg0: i32, %arg1: memref<4x128xbf16, #tpu.memory_space<vmem>>, %arg2: memref<4x128xbf16, #tpu.memory_space<vmem>>, %arg3: memref<4x128xbf16, #tpu.memory_space<vmem>>, %arg4: memref<6x128x128xbf16, #tpu.memory_space<vmem>>, %arg5: memref<16x128xf32, #tpu.memory_space<vmem>>, %arg6: memref<4x128xf32, #tpu.memory_space<vmem>>) attributes {dimension_semantics = [#tpu.dimension_semantics<parallel>], iteration_bounds = array<i64: 1>, scalar_prefetch = 0 : i64, scratch_operands = 0 : i64, tpu.core_type = #tpu.core_type<tc>, window_params = [{transform_indices = @transform_0, window_bounds = array<i64: 4, 128>}, {transform_indices = @transform_1, window_bounds = array<i64: 4, 128>}, {transform_indices = @transform_2, window_bounds = array<i64: 4, 128>}, {pipeline_mode = #tpu.pipeline_mode<synchronous>, transform_indices = @transform_3, window_bounds = array<i64: 6, 128, 128>}, {pipeline_mode = #tpu.pipeline_mode<synchronous>, transform_indices = @transform_4, window_bounds = array<i64: 16, 128>}, {transform_indices = @transform_5, window_bounds = array<i64: 4, 128>}]} {
    %c4 = arith.constant 4 : index
    %c0 = arith.constant 0 : index
    %c0_0 = arith.constant 0 : index
    %0 = vector.load %arg4[%c4, %c0, %c0_0] : memref<6x128x128xbf16, #tpu.memory_space<vmem>>, vector<1x128x128xbf16>
    %1 = vector.shape_cast %0 : vector<1x128x128xbf16> to vector<128x128xbf16>
    %c5 = arith.constant 5 : index
    %c0_1 = arith.constant 0 : index
    %c0_2 = arith.constant 0 : index
    %2 = vector.load %arg4[%c5, %c0_1, %c0_2] : memref<6x128x128xbf16, #tpu.memory_space<vmem>>, vector<1x128x128xbf16>
    %3 = vector.shape_cast %2 : vector<1x128x128xbf16> to vector<128x128xbf16>
    %c0_3 = arith.constant 0 : index
    %c0_4 = arith.constant 0 : index
    %4 = vector.load %arg1[%c0_3, %c0_4] : memref<4x128xbf16, #tpu.memory_space<vmem>>, vector<4x128xbf16>
    %c0_5 = arith.constant 0 : index
    %c0_6 = arith.constant 0 : index
    %c0_7 = arith.constant 0 : index
    %5 = vector.load %arg4[%c0_5, %c0_6, %c0_7] : memref<6x128x128xbf16, #tpu.memory_space<vmem>>, vector<1x128x128xbf16>
    %6 = vector.shape_cast %5 : vector<1x128x128xbf16> to vector<128x128xbf16>
    %cst = arith.constant dense<0.000000e+00> : vector<4x128xf32>
    %7 = tpu.matmul %4, %6, %cst {dimension_numbers = #tpu.dot_dimension_numbers<[1], [0], [0], [1], [0, 0, 1, 1], [], []>} : vector<4x128xbf16>, vector<128x128xbf16>, vector<4x128xf32> -> vector<4x128xf32>
    %c0_8 = arith.constant 0 : index
    %c0_9 = arith.constant 0 : index
    %8 = vector.load %arg5[%c0_8, %c0_9] : memref<16x128xf32, #tpu.memory_space<vmem>>, vector<1x128xf32>
    %9 = vector.broadcast %8 : vector<1x128xf32> to vector<4x128xf32>
    %10 = arith.addf %7, %9 : vector<4x128xf32>
    %11 = arith.mulf %10, %10 : vector<4x128xf32>
    %12 = arith.truncf %11 : vector<4x128xf32> to vector<4x128xbf16>
    %cst_10 = arith.constant dense<0.000000e+00> : vector<4x128xf32>
    %13 = tpu.matmul %12, %1, %cst_10 {dimension_numbers = #tpu.dot_dimension_numbers<[1], [0], [0], [1], [0, 0, 1, 1], [], []>} : vector<4x128xbf16>, vector<128x128xbf16>, vector<4x128xf32> -> vector<4x128xf32>
    %cst_11 = arith.constant 9.99999974E-6 : f32
    %14 = vector.broadcast %cst_11 : f32 to vector<4x128xf32>
    %15 = arith.addf %13, %14 : vector<4x128xf32>
    %16 = math.rsqrt %15 : vector<4x128xf32>
    %17 = arith.mulf %10, %16 : vector<4x128xf32>
    %c4_12 = arith.constant 4 : index
    %c0_13 = arith.constant 0 : index
    %18 = vector.load %arg5[%c4_12, %c0_13] : memref<16x128xf32, #tpu.memory_space<vmem>>, vector<1x128xf32>
    %19 = vector.broadcast %18 : vector<1x128xf32> to vector<4x128xf32>
    %20 = arith.mulf %17, %19 : vector<4x128xf32>
    %c7 = arith.constant 7 : index
    %c0_14 = arith.constant 0 : index
    %21 = vector.load %arg5[%c7, %c0_14] : memref<16x128xf32, #tpu.memory_space<vmem>>, vector<1x128xf32>
    %22 = vector.broadcast %21 : vector<1x128xf32> to vector<4x128xf32>
    %23 = arith.addf %20, %22 : vector<4x128xf32>
    %c0_15 = arith.constant 0 : index
    %c0_16 = arith.constant 0 : index
    %24 = vector.load %arg2[%c0_15, %c0_16] : memref<4x128xbf16, #tpu.memory_space<vmem>>, vector<4x128xbf16>
    %c1 = arith.constant 1 : index
    %c0_17 = arith.constant 0 : index
    %c0_18 = arith.constant 0 : index
    %25 = vector.load %arg4[%c1, %c0_17, %c0_18] : memref<6x128x128xbf16, #tpu.memory_space<vmem>>, vector<1x128x128xbf16>
    %26 = vector.shape_cast %25 : vector<1x128x128xbf16> to vector<128x128xbf16>
    %cst_19 = arith.constant dense<0.000000e+00> : vector<4x128xf32>
    %27 = tpu.matmul %24, %26, %cst_19 {dimension_numbers = #tpu.dot_dimension_numbers<[1], [0], [0], [1], [0, 0, 1, 1], [], []>} : vector<4x128xbf16>, vector<128x128xbf16>, vector<4x128xf32> -> vector<4x128xf32>
    %c1_20 = arith.constant 1 : index
    %c0_21 = arith.constant 0 : index
    %28 = vector.load %arg5[%c1_20, %c0_21] : memref<16x128xf32, #tpu.memory_space<vmem>>, vector<1x128xf32>
    %29 = vector.broadcast %28 : vector<1x128xf32> to vector<4x128xf32>
    %30 = arith.addf %27, %29 : vector<4x128xf32>
    %31 = arith.mulf %30, %30 : vector<4x128xf32>
    %32 = arith.truncf %31 : vector<4x128xf32> to vector<4x128xbf16>
    %cst_22 = arith.constant dense<0.000000e+00> : vector<4x128xf32>
    %33 = tpu.matmul %32, %1, %cst_22 {dimension_numbers = #tpu.dot_dimension_numbers<[1], [0], [0], [1], [0, 0, 1, 1], [], []>} : vector<4x128xbf16>, vector<128x128xbf16>, vector<4x128xf32> -> vector<4x128xf32>
    %cst_23 = arith.constant 9.99999974E-6 : f32
    %34 = vector.broadcast %cst_23 : f32 to vector<4x128xf32>
    %35 = arith.addf %33, %34 : vector<4x128xf32>
    %36 = math.rsqrt %35 : vector<4x128xf32>
    %37 = arith.mulf %30, %36 : vector<4x128xf32>
    %c5_24 = arith.constant 5 : index
    %c0_25 = arith.constant 0 : index
    %38 = vector.load %arg5[%c5_24, %c0_25] : memref<16x128xf32, #tpu.memory_space<vmem>>, vector<1x128xf32>
    %39 = vector.broadcast %38 : vector<1x128xf32> to vector<4x128xf32>
    %40 = arith.mulf %37, %39 : vector<4x128xf32>
    %c8 = arith.constant 8 : index
    %c0_26 = arith.constant 0 : index
    %41 = vector.load %arg5[%c8, %c0_26] : memref<16x128xf32, #tpu.memory_space<vmem>>, vector<1x128xf32>
    %42 = vector.broadcast %41 : vector<1x128xf32> to vector<4x128xf32>
    %43 = arith.addf %40, %42 : vector<4x128xf32>
    %c0_27 = arith.constant 0 : index
    %c0_28 = arith.constant 0 : index
    %44 = vector.load %arg3[%c0_27, %c0_28] : memref<4x128xbf16, #tpu.memory_space<vmem>>, vector<4x128xbf16>
    %c2 = arith.constant 2 : index
    %c0_29 = arith.constant 0 : index
    %c0_30 = arith.constant 0 : index
    %45 = vector.load %arg4[%c2, %c0_29, %c0_30] : memref<6x128x128xbf16, #tpu.memory_space<vmem>>, vector<1x128x128xbf16>
    %46 = vector.shape_cast %45 : vector<1x128x128xbf16> to vector<128x128xbf16>
    %cst_31 = arith.constant dense<0.000000e+00> : vector<4x128xf32>
    %47 = tpu.matmul %44, %46, %cst_31 {dimension_numbers = #tpu.dot_dimension_numbers<[1], [0], [0], [1], [0, 0, 1, 1], [], []>} : vector<4x128xbf16>, vector<128x128xbf16>, vector<4x128xf32> -> vector<4x128xf32>
    %c2_32 = arith.constant 2 : index
    %c0_33 = arith.constant 0 : index
    %48 = vector.load %arg5[%c2_32, %c0_33] : memref<16x128xf32, #tpu.memory_space<vmem>>, vector<1x128xf32>
    %49 = vector.broadcast %48 : vector<1x128xf32> to vector<4x128xf32>
    %50 = arith.addf %47, %49 : vector<4x128xf32>
    %51 = arith.mulf %50, %50 : vector<4x128xf32>
    %52 = arith.truncf %51 : vector<4x128xf32> to vector<4x128xbf16>
    %cst_34 = arith.constant dense<0.000000e+00> : vector<4x128xf32>
    %53 = tpu.matmul %52, %1, %cst_34 {dimension_numbers = #tpu.dot_dimension_numbers<[1], [0], [0], [1], [0, 0, 1, 1], [], []>} : vector<4x128xbf16>, vector<128x128xbf16>, vector<4x128xf32> -> vector<4x128xf32>
    %cst_35 = arith.constant 9.99999974E-6 : f32
    %54 = vector.broadcast %cst_35 : f32 to vector<4x128xf32>
    %55 = arith.addf %53, %54 : vector<4x128xf32>
    %56 = math.rsqrt %55 : vector<4x128xf32>
    %57 = arith.mulf %50, %56 : vector<4x128xf32>
    %c6 = arith.constant 6 : index
    %c0_36 = arith.constant 0 : index
    %58 = vector.load %arg5[%c6, %c0_36] : memref<16x128xf32, #tpu.memory_space<vmem>>, vector<1x128xf32>
    %59 = vector.broadcast %58 : vector<1x128xf32> to vector<4x128xf32>
    %60 = arith.mulf %57, %59 : vector<4x128xf32>
    %c9 = arith.constant 9 : index
    %c0_37 = arith.constant 0 : index
    %61 = vector.load %arg5[%c9, %c0_37] : memref<16x128xf32, #tpu.memory_space<vmem>>, vector<1x128xf32>
    %62 = vector.broadcast %61 : vector<1x128xf32> to vector<4x128xf32>
    %63 = arith.addf %60, %62 : vector<4x128xf32>
    %64 = tpu.iota {dimensions = array<i32: 1>} : vector<4x128xi32>
    %c32_i32 = arith.constant 32 : i32
    %c0_i32 = arith.constant 0 : i32
    %65 = arith.cmpi eq, %c32_i32, %c0_i32 : i32
    %c1_i32 = arith.constant 1 : i32
    %66 = arith.select %65, %c1_i32, %c32_i32 : i32
    %67 = vector.broadcast %66 : i32 to vector<4x128xi32>
    %68 = arith.remsi %64, %67 : vector<4x128xi32>
    %c0_i32_38 = arith.constant 0 : i32
    %69 = vector.broadcast %c0_i32_38 : i32 to vector<4x128xi32>
    %70 = arith.cmpi ne, %68, %69 : vector<4x128xi32>
    %c0_i32_39 = arith.constant 0 : i32
    %71 = vector.broadcast %c0_i32_39 : i32 to vector<4x128xi32>
    %72 = arith.cmpi slt, %68, %71 : vector<4x128xi32>
    %c0_i32_40 = arith.constant 0 : i32
    %73 = arith.cmpi slt, %66, %c0_i32_40 : i32
    %74 = vector.broadcast %73 : i1 to vector<4x128xi1>
    %75 = vector.broadcast %74 : vector<4x128xi1> to vector<4x128xi1>
    %76 = arith.xori %72, %75 : vector<4x128xi1>
    %77 = arith.andi %76, %70 : vector<4x128xi1>
    %78 = vector.broadcast %66 : i32 to vector<4x128xi32>
    %79 = arith.addi %68, %78 : vector<4x128xi32>
    %80 = arith.select %77, %79, %68 : vector<4x128xi1>, vector<4x128xi32>
    %c24_i32 = arith.constant 24 : i32
    %81 = vector.broadcast %c24_i32 : i32 to vector<4x128xi32>
    %82 = arith.cmpi slt, %80, %81 : vector<4x128xi32>
    %c16_i32 = arith.constant 16 : i32
    %83 = vector.broadcast %c16_i32 : i32 to vector<4x128xi32>
    %84 = arith.cmpi slt, %80, %83 : vector<4x128xi32>
    %c8_i32 = arith.constant 8 : i32
    %85 = vector.broadcast %c8_i32 : i32 to vector<4x128xi32>
    %86 = arith.cmpi slt, %80, %85 : vector<4x128xi32>
    %87 = arith.mulf %23, %43 : vector<4x128xf32>
    %88 = arith.truncf %87 : vector<4x128xf32> to vector<4x128xbf16>
    %cst_41 = arith.constant dense<0.000000e+00> : vector<4x128xf32>
    %89 = tpu.matmul %88, %3, %cst_41 {dimension_numbers = #tpu.dot_dimension_numbers<[1], [0], [0], [1], [0, 0, 1, 1], [], []>} : vector<4x128xbf16>, vector<128x128xbf16>, vector<4x128xf32> -> vector<4x128xf32>
    %c120_i32 = arith.constant 120 : i32
    %90 = tpu.dynamic_rotate %43 by %c120_i32 dim 1 : vector<4x128xf32>, i32 -> vector<4x128xf32>
    %c24_i32_42 = arith.constant 24 : i32
    %91 = tpu.dynamic_rotate %43 by %c24_i32_42 dim 1 : vector<4x128xf32>, i32 -> vector<4x128xf32>
    %92 = arith.select %82, %90, %91 : vector<4x128xi1>, vector<4x128xf32>
    %93 = arith.mulf %23, %92 : vector<4x128xf32>
    %94 = arith.truncf %93 : vector<4x128xf32> to vector<4x128xbf16>
    %cst_43 = arith.constant dense<0.000000e+00> : vector<4x128xf32>
    %95 = tpu.matmul %94, %3, %cst_43 {dimension_numbers = #tpu.dot_dimension_numbers<[1], [0], [0], [1], [0, 0, 1, 1], [], []>} : vector<4x128xbf16>, vector<128x128xbf16>, vector<4x128xf32> -> vector<4x128xf32>
    %c112_i32 = arith.constant 112 : i32
    %96 = tpu.dynamic_rotate %43 by %c112_i32 dim 1 : vector<4x128xf32>, i32 -> vector<4x128xf32>
    %c16_i32_44 = arith.constant 16 : i32
    %97 = tpu.dynamic_rotate %43 by %c16_i32_44 dim 1 : vector<4x128xf32>, i32 -> vector<4x128xf32>
    %98 = arith.select %84, %96, %97 : vector<4x128xi1>, vector<4x128xf32>
    %99 = arith.mulf %23, %98 : vector<4x128xf32>
    %100 = arith.truncf %99 : vector<4x128xf32> to vector<4x128xbf16>
    %cst_45 = arith.constant dense<0.000000e+00> : vector<4x128xf32>
    %101 = tpu.matmul %100, %3, %cst_45 {dimension_numbers = #tpu.dot_dimension_numbers<[1], [0], [0], [1], [0, 0, 1, 1], [], []>} : vector<4x128xbf16>, vector<128x128xbf16>, vector<4x128xf32> -> vector<4x128xf32>
    %c104_i32 = arith.constant 104 : i32
    %102 = tpu.dynamic_rotate %43 by %c104_i32 dim 1 : vector<4x128xf32>, i32 -> vector<4x128xf32>
    %c8_i32_46 = arith.constant 8 : i32
    %103 = tpu.dynamic_rotate %43 by %c8_i32_46 dim 1 : vector<4x128xf32>, i32 -> vector<4x128xf32>
    %104 = arith.select %86, %102, %103 : vector<4x128xi1>, vector<4x128xf32>
    %105 = arith.mulf %23, %104 : vector<4x128xf32>
    %106 = arith.truncf %105 : vector<4x128xf32> to vector<4x128xbf16>
    %cst_47 = arith.constant dense<0.000000e+00> : vector<4x128xf32>
    %107 = tpu.matmul %106, %3, %cst_47 {dimension_numbers = #tpu.dot_dimension_numbers<[1], [0], [0], [1], [0, 0, 1, 1], [], []>} : vector<4x128xbf16>, vector<128x128xbf16>, vector<4x128xf32> -> vector<4x128xf32>
    %108 = arith.maximumf %89, %95 : vector<4x128xf32>
    %109 = arith.maximumf %108, %101 : vector<4x128xf32>
    %110 = arith.maximumf %109, %107 : vector<4x128xf32>
    %111 = arith.subf %89, %110 : vector<4x128xf32>
    %112 = math.exp %111 : vector<4x128xf32>
    %113 = arith.mulf %112, %63 : vector<4x128xf32>
    %114 = arith.subf %95, %110 : vector<4x128xf32>
    %115 = math.exp %114 : vector<4x128xf32>
    %c120_i32_48 = arith.constant 120 : i32
    %116 = tpu.dynamic_rotate %63 by %c120_i32_48 dim 1 : vector<4x128xf32>, i32 -> vector<4x128xf32>
    %c24_i32_49 = arith.constant 24 : i32
    %117 = tpu.dynamic_rotate %63 by %c24_i32_49 dim 1 : vector<4x128xf32>, i32 -> vector<4x128xf32>
    %118 = arith.select %82, %116, %117 : vector<4x128xi1>, vector<4x128xf32>
    %119 = arith.addf %112, %115 : vector<4x128xf32>
    %120 = arith.mulf %115, %118 : vector<4x128xf32>
    %121 = arith.addf %113, %120 : vector<4x128xf32>
    %122 = arith.subf %101, %110 : vector<4x128xf32>
    %123 = math.exp %122 : vector<4x128xf32>
    %c112_i32_50 = arith.constant 112 : i32
    %124 = tpu.dynamic_rotate %63 by %c112_i32_50 dim 1 : vector<4x128xf32>, i32 -> vector<4x128xf32>
    %c16_i32_51 = arith.constant 16 : i32
    %125 = tpu.dynamic_rotate %63 by %c16_i32_51 dim 1 : vector<4x128xf32>, i32 -> vector<4x128xf32>
    %126 = arith.select %84, %124, %125 : vector<4x128xi1>, vector<4x128xf32>
    %127 = arith.addf %119, %123 : vector<4x128xf32>
    %128 = arith.mulf %123, %126 : vector<4x128xf32>
    %129 = arith.addf %121, %128 : vector<4x128xf32>
    %130 = arith.subf %107, %110 : vector<4x128xf32>
    %131 = math.exp %130 : vector<4x128xf32>
    %c104_i32_52 = arith.constant 104 : i32
    %132 = tpu.dynamic_rotate %63 by %c104_i32_52 dim 1 : vector<4x128xf32>, i32 -> vector<4x128xf32>
    %c8_i32_53 = arith.constant 8 : i32
    %133 = tpu.dynamic_rotate %63 by %c8_i32_53 dim 1 : vector<4x128xf32>, i32 -> vector<4x128xf32>
    %134 = arith.select %86, %132, %133 : vector<4x128xi1>, vector<4x128xf32>
    %135 = arith.addf %127, %131 : vector<4x128xf32>
    %136 = arith.mulf %131, %134 : vector<4x128xf32>
    %137 = arith.addf %129, %136 : vector<4x128xf32>
    %138 = tpu.reciprocal %135 {approx = true} : vector<4x128xf32> -> vector<4x128xf32>
    %139 = arith.mulf %137, %138 : vector<4x128xf32>
    %140 = arith.truncf %139 : vector<4x128xf32> to vector<4x128xbf16>
    %c3 = arith.constant 3 : index
    %c0_54 = arith.constant 0 : index
    %c0_55 = arith.constant 0 : index
    %141 = vector.load %arg4[%c3, %c0_54, %c0_55] : memref<6x128x128xbf16, #tpu.memory_space<vmem>>, vector<1x128x128xbf16>
    %142 = vector.shape_cast %141 : vector<1x128x128xbf16> to vector<128x128xbf16>
    %cst_56 = arith.constant dense<0.000000e+00> : vector<4x128xf32>
    %143 = tpu.matmul %140, %142, %cst_56 {dimension_numbers = #tpu.dot_dimension_numbers<[1], [0], [0], [1], [0, 0, 1, 1], [], []>} : vector<4x128xbf16>, vector<128x128xbf16>, vector<4x128xf32> -> vector<4x128xf32>
    %c3_57 = arith.constant 3 : index
    %c0_58 = arith.constant 0 : index
    %144 = vector.load %arg5[%c3_57, %c0_58] : memref<16x128xf32, #tpu.memory_space<vmem>>, vector<1x128xf32>
    %145 = vector.broadcast %144 : vector<1x128xf32> to vector<4x128xf32>
    %146 = arith.addf %143, %145 : vector<4x128xf32>
    %c0_59 = arith.constant 0 : index
    %c0_60 = arith.constant 0 : index
    %147 = vector.load %arg6[%c0_59, %c0_60] : memref<4x128xf32, #tpu.memory_space<vmem>>, vector<4x128xf32>
    tpu.vector_store %arg6[%c0_59, %c0_60], %146 {strides = array<i32>} : memref<4x128xf32, #tpu.memory_space<vmem>>, vector<4x128xf32>,
    return
  }
  func.func @transform_0(%arg0: i32) -> (i32, i32) {
    %c0_i32 = arith.constant 0 : i32
    %c0_i32_0 = arith.constant 0 : i32
    return %arg0, %c0_i32 : i32, i32
  }
  func.func @transform_1(%arg0: i32) -> (i32, i32) {
    %c0_i32 = arith.constant 0 : i32
    %c0_i32_0 = arith.constant 0 : i32
    return %arg0, %c0_i32 : i32, i32
  }
  func.func @transform_2(%arg0: i32) -> (i32, i32) {
    %c0_i32 = arith.constant 0 : i32
    %c0_i32_0 = arith.constant 0 : i32
    return %arg0, %c0_i32 : i32, i32
  }
  func.func @transform_3(%arg0: i32) -> (i32, i32, i32) {
    %c0_i32 = arith.constant 0 : i32
    %c0_i32_0 = arith.constant 0 : i32
    %c0_i32_1 = arith.constant 0 : i32
    %c0_i32_2 = arith.constant 0 : i32
    return %c0_i32, %c0_i32_0, %c0_i32_1 : i32, i32, i32
  }
  func.func @transform_4(%arg0: i32) -> (i32, i32) {
    %c0_i32 = arith.constant 0 : i32
    %c0_i32_0 = arith.constant 0 : i32
    %c0_i32_1 = arith.constant 0 : i32
    return %c0_i32, %c0_i32_0 : i32, i32
  }
  func.func @transform_5(%arg0: i32) -> (i32, i32) {
    %c0_i32 = arith.constant 0 : i32
    %c0_i32_0 = arith.constant 0 : i32
    return %arg0, %c0_i32 : i32, i32
  }
}

</mosaic_0001>

<llo_original>
// kernel: tpu_custom_call.1
$region0: #{tpu_custom_call.1}
  #allocation0 [shape = 'u32[]', space=smem, size = 0x4, offset = 0x4, fixed_abs, tag = 'smem constant byte address 0x4 - core index']
  #allocation1 [shape = 'u32[144,128]{1,0:T(1,128)}', space=vmem, size = 0x12000, scoped, tag = 'internal scratch']
  %s0 = inlined_call_operand.hbm [shape: bf16[4,128], index: 0, kind: input, shape index: {}]
  %s1 = inlined_call_operand.vmem [shape: bf16[4,128], index: 1, kind: input, shape index: {}]
  %s2 = inlined_call_operand.vmem [shape: bf16[4,128], index: 2, kind: input, shape index: {}]
  %s3 = inlined_call_operand.hbm [shape: bf16[6,128,128], index: 3, kind: input, shape index: {}]
  %s4 = inlined_call_operand.hbm [shape: f32[16,128], index: 4, kind: input, shape index: {}]
  %s5 = inlined_call_operand.hbm [shape: f32[4,128], index: 5, kind: output, shape index: {}]
  %s6 = sld [smem:[#allocation0]]
  $region42: #{tpu_custom_call.1} parent=0
    _
  %s8 = ssub.s32 1, %s6
  %s9 = scalar_select 0, %s8, %s6
  $region1: #{tpu_custom_call.1} parent=0
    #allocation2 [shape = 'u8[1024]{0}', space=vmem, size = 0x400, scoped, tag = 'input window, operand 0, single buffered']
    #allocation3 [shape = 's32[1]{0}', space=sflag, size = 0x4, scoped, tag = 'scoped memory for tpu_custom_call.1']
    #allocation4 [shape = 's32[1]{0}', space=sflag, size = 0x4, scoped, tag = 'scoped memory for tpu_custom_call.1']
    #allocation5 [shape = 'u8[196608]{0}', space=vmem, size = 0x30000, scoped, tag = 'input window, operand 3, single buffered']
    #allocation6 [shape = 's32[1]{0}', space=sflag, size = 0x4, scoped, tag = 'scoped memory for tpu_custom_call.1']
    #allocation7 [shape = 'u8[8192]{0}', space=vmem, size = 0x2000, scoped, tag = 'input window, operand 4, single buffered']
    #allocation8 [shape = 'u8[2048]{0}', space=vmem, size = 0x800, scoped, tag = 'output window, operand 0, single buffered']
    %10 = vsyncpa [#allocation3], 0
    %11 = vsyncpa [#allocation6], 0
    %12 = vsyncpa [#allocation4], 0
    // Predicated region
    $region2: #{tpu_custom_call.1} parent=1 // pred_check
      _
    $region3: #{tpu_custom_call.1} parent=1 // pred_check_branch
      %14 = sbr.rel (0) target = $region5
    $region4: #{tpu_custom_call.1} parent=1 // pred_region
      %s16 = ssub.s32 32, 32
      %17 = vsyncadd [#allocation3], %s16
      %s19 = sshll.u32 [#allocation2], 4
      %s20 = int_to_ptr.vmem [resolvable:$true] %s19
      %22 = dma.hbm_to_vmem [thread:$0]  %s0, 32, %s20, [#allocation3]
    $region5: #{tpu_custom_call.1} parent=1 // pred_fallthru
      _
    // Predicated region
    $region6: #{tpu_custom_call.1} parent=1 // pred_check
      _
    $region7: #{tpu_custom_call.1} parent=1 // pred_check_branch
      %24 = sbr.rel (0) target = $region9
    $region8: #{tpu_custom_call.1} parent=1 // pred_region
      _
    $region9: #{tpu_custom_call.1} parent=1 // pred_fallthru
      _
    // Predicated region
    $region10: #{tpu_custom_call.1} parent=1 // pred_check
      _
    $region11: #{tpu_custom_call.1} parent=1 // pred_check_branch
      %26 = sbr.rel (0) target = $region13
    $region12: #{tpu_custom_call.1} parent=1 // pred_region
      _
    $region13: #{tpu_custom_call.1} parent=1 // pred_fallthru
      _
    // Predicated region
    $region14: #{tpu_custom_call.1} parent=1 // pred_check
      _
    $region15: #{tpu_custom_call.1} parent=1 // pred_check_branch
      %28 = sbr.rel (0) target = $region17
    $region16: #{tpu_custom_call.1} parent=1 // pred_region
      %s30 = ssub.s32 6144, 6144
      %31 = vsyncadd [#allocation6], %s30
      %s32 = sshll.u32 [#allocation5], 4
      %s33 = int_to_ptr.vmem [resolvable:$true] %s32
      %38 = dma.hbm_to_vmem [thread:$0]  %s3, 6144, %s33, [#allocation6], 64, 64, 4
    $region17: #{tpu_custom_call.1} parent=1 // pred_fallthru
      _
    // Predicated region
    $region18: #{tpu_custom_call.1} parent=1 // pred_check
      _
    $region19: #{tpu_custom_call.1} parent=1 // pred_check_branch
      %40 = sbr.rel (0) target = $region21
    $region20: #{tpu_custom_call.1} parent=1 // pred_region
      %s42 = ssub.s32 256, 256
      %43 = vsyncadd [#allocation6], %s42
      %s44 = sshll.u32 [#allocation7], 4
      %s45 = int_to_ptr.vmem [resolvable:$true] %s44
      %50 = dma.hbm_to_vmem [thread:$0]  %s4, 256, %s45, [#allocation6], 128, 128, 8
    $region21: #{tpu_custom_call.1} parent=1 // pred_fallthru
      _
    // Predicated region
    $region22: #{tpu_custom_call.1} parent=1 // pred_check
      _
    $region23: #{tpu_custom_call.1} parent=1 // pred_check_branch
      %52 = sbr.rel (0) target = $region25
    $region24: #{tpu_custom_call.1} parent=1 // pred_region
      %53 = dma.done [#allocation3], 32
    $region25: #{tpu_custom_call.1} parent=1 // pred_fallthru
      _
    // Predicated region
    $region26: #{tpu_custom_call.1} parent=1 // pred_check
      _
    $region27: #{tpu_custom_call.1} parent=1 // pred_check_branch
      %55 = sbr.rel (0) target = $region29
    $region28: #{tpu_custom_call.1} parent=1 // pred_region
      %56 = dma.done [#allocation6], 6144
    $region29: #{tpu_custom_call.1} parent=1 // pred_fallthru
      _
    // Predicated region
    $region30: #{tpu_custom_call.1} parent=1 // pred_check
      _
    $region31: #{tpu_custom_call.1} parent=1 // pred_check_branch
      %58 = sbr.rel (0) target = $region33
    $region32: #{tpu_custom_call.1} parent=1 // pred_region
      %59 = dma.done [#allocation6], 256
    $region33: #{tpu_custom_call.1} parent=1 // pred_fallthru
      _
    %s61 = scalar_lea.vmem [#allocation5], 256
    %v62 = vld [vmem:[%s61] sm:$0xf]
    %v63 = vld [vmem:[%s61 + $0x4] sm:$0xf]
    %v64 = vld [vmem:[%s61 + $0x8] sm:$0xf]
    %v65 = vld [vmem:[%s61 + $0xc] sm:$0xf]
    %v66 = vld [vmem:[%s61 + $0x10] sm:$0xf]
    %v67 = vld [vmem:[%s61 + $0x14] sm:$0xf]
    %v68 = vld [vmem:[%s61 + $0x18] sm:$0xf]
    %v69 = vld [vmem:[%s61 + $0x1c] sm:$0xf]
    %v70 = vld [vmem:[%s61 + $0x20] sm:$0xf]
    %v71 = vld [vmem:[%s61 + $0x24] sm:$0xf]
    %v72 = vld [vmem:[%s61 + $0x28] sm:$0xf]
    %v73 = vld [vmem:[%s61 + $0x2c] sm:$0xf]
    %v74 = vld [vmem:[%s61 + $0x30] sm:$0xf]
    %v75 = vld [vmem:[%s61 + $0x34] sm:$0xf]
    %v76 = vld [vmem:[%s61 + $0x38] sm:$0xf]
    %v77 = vld [vmem:[%s61 + $0x3c] sm:$0xf]
    %s78 = scalar_lea.vmem [#allocation5], 320
    %v79 = vld [vmem:[%s78] sm:$0xf]
    %v80 = vld [vmem:[%s78 + $0x4] sm:$0xf]
    %v81 = vld [vmem:[%s78 + $0x8] sm:$0xf]
    %v82 = vld [vmem:[%s78 + $0xc] sm:$0xf]
    %v83 = vld [vmem:[%s78 + $0x10] sm:$0xf]
    %v84 = vld [vmem:[%s78 + $0x14] sm:$0xf]
    %v85 = vld [vmem:[%s78 + $0x18] sm:$0xf]
    %v86 = vld [vmem:[%s78 + $0x1c] sm:$0xf]
    %v87 = vld [vmem:[%s78 + $0x20] sm:$0xf]
    %v88 = vld [vmem:[%s78 + $0x24] sm:$0xf]
    %v89 = vld [vmem:[%s78 + $0x28] sm:$0xf]
    %v90 = vld [vmem:[%s78 + $0x2c] sm:$0xf]
    %v91 = vld [vmem:[%s78 + $0x30] sm:$0xf]
    %v92 = vld [vmem:[%s78 + $0x34] sm:$0xf]
    %v93 = vld [vmem:[%s78 + $0x38] sm:$0xf]
    %v94 = vld [vmem:[%s78 + $0x3c] sm:$0xf]
    %v95 = vld [vmem:[#allocation2] sm:$0x3]
    %v96 = vld [vmem:[#allocation5] sm:$0xf]
    %v97 = vld [vmem:[#allocation5 + $0x4] sm:$0xf]
    %v98 = vld [vmem:[#allocation5 + $0x8] sm:$0xf]
    %v99 = vld [vmem:[#allocation5 + $0xc] sm:$0xf]
    %v100 = vld [vmem:[#allocation5 + $0x10] sm:$0xf]
    %v101 = vld [vmem:[#allocation5 + $0x14] sm:$0xf]
    %v102 = vld [vmem:[#allocation5 + $0x18] sm:$0xf]
    %v103 = vld [vmem:[#allocation5 + $0x1c] sm:$0xf]
    %v104 = vld [vmem:[#allocation5 + $0x20] sm:$0xf]
    %v105 = vld [vmem:[#allocation5 + $0x24] sm:$0xf]
    %v106 = vld [vmem:[#allocation5 + $0x28] sm:$0xf]
    %v107 = vld [vmem:[#allocation5 + $0x2c] sm:$0xf]
    %v108 = vld [vmem:[#allocation5 + $0x30] sm:$0xf]
    %v109 = vld [vmem:[#allocation5 + $0x34] sm:$0xf]
    %v110 = vld [vmem:[#allocation5 + $0x38] sm:$0xf]
    %v111 = vld [vmem:[#allocation5 + $0x3c] sm:$0xf]
    %v112 = vld [vmem:[#allocation7] sm:$0x1]
    %v113 = vlaneseq
    %v114 = vshrl.u32 %v113, 7
    %v115 = vsub.s32 0, %v114
    %v116 = vrot.slane %v112, %v115
    %v133 = vunpack.c.l.b16 %v96
    %v134 = vunpack.c.l.b16 %v97
    %v135 = vunpack.c.l.b16 %v98
    %v136 = vunpack.c.l.b16 %v99
    %v137 = vunpack.c.l.b16 %v100
    %v138 = vunpack.c.l.b16 %v101
    %v139 = vunpack.c.l.b16 %v102
    %v140 = vunpack.c.l.b16 %v103
    %v141 = vunpack.c.l.b16 %v104
    %v142 = vunpack.c.l.b16 %v105
    %v143 = vunpack.c.l.b16 %v106
    %v144 = vunpack.c.l.b16 %v107
    %v145 = vunpack.c.l.b16 %v108
    %v146 = vunpack.c.l.b16 %v109
    %v147 = vunpack.c.l.b16 %v110
    %v148 = vunpack.c.l.b16 %v111
    %v149 = vpack.c.b16 %v134, %v133
    %v150 = vpack.c.b16 %v136, %v135
    %v151 = vpack.c.b16 %v138, %v137
    %v152 = vpack.c.b16 %v140, %v139
    %v153 = vpack.c.b16 %v142, %v141
    %v154 = vpack.c.b16 %v144, %v143
    %v155 = vpack.c.b16 %v146, %v145
    %v156 = vpack.c.b16 %v148, %v147
    %165 = vmatprep.subr.bf16.mxu0 0
    %166 = vmatpush1.bf16.msra.mxu0 %v149
    %167 = vmatprep.subr.bf16.mxu0 0
    %168 = vmatpush1.bf16.msra.mxu0 %v150
    %169 = vmatprep.subr.bf16.mxu0 0
    %170 = vmatpush1.bf16.msra.mxu0 %v151
    %171 = vmatprep.subr.bf16.mxu0 0
    %172 = vmatpush1.bf16.msra.mxu0 %v152
    %173 = vmatprep.subr.bf16.mxu0 0
    %174 = vmatpush1.bf16.msra.mxu0 %v153
    %175 = vmatprep.subr.bf16.mxu0 0
    %176 = vmatpush1.bf16.msra.mxu0 %v154
    %177 = vmatprep.subr.bf16.mxu0 0
    %178 = vmatpush1.bf16.msra.mxu0 %v155
    %179 = vmatprep.subr.bf16.mxu0 0
    %180 = vmatpush1.bf16.msra.mxu0 %v156
    %181 = vmatprep.subr.bf16.mxu0 0
    %182 = vmatpush1.bf16.msra.mxu0 0
    %183 = vmatprep.subr.bf16.mxu0 0
    %184 = vmatpush1.bf16.msra.mxu0 0
    %185 = vmatprep.subr.bf16.mxu0 0
    %186 = vmatpush1.bf16.msra.mxu0 0
    %187 = vmatprep.subr.bf16.mxu0 0
    %188 = vmatpush1.bf16.msra.mxu0 0
    %189 = vmatprep.subr.bf16.mxu0 0
    %190 = vmatpush1.bf16.msra.mxu0 0
    %191 = vmatprep.subr.bf16.mxu0 0
    %192 = vmatpush1.bf16.msra.mxu0 0
    %193 = vmatprep.subr.bf16.mxu0 0
    %194 = vmatpush1.bf16.msra.mxu0 0
    %195 = vmatprep.subr.bf16.mxu0 0
    %196 = vmatpush1.bf16.msra.mxu0 0
    %197 = vmatprep.mubr.bf16.mxu0 0
    %198 = vmatmul.mubr.bf16.gmra.mrb[0].mxu0 %v95
    %v199 = vpop.f32.mrb[0].mxu0
    %v200 = vadd.f32 %v116, %v199
    %v201 = vpop.f32.mrb[0].mxu0
    %v202 = vpop.f32.mrb[0].mxu0
    %v203 = vpop.f32.mrb[0].mxu0
    %204 = vdwg.mxu0
    %v205 = vmul.f32 %v200, %v200
    %v206 = vpack.c.bf16 %v205, %v205
    %v223 = vunpack.c.l.b16 %v62
    %v224 = vunpack.c.l.b16 %v63
    %v225 = vunpack.c.l.b16 %v64
    %v226 = vunpack.c.l.b16 %v65
    %v227 = vunpack.c.l.b16 %v66
    %v228 = vunpack.c.l.b16 %v67
    %v229 = vunpack.c.l.b16 %v68
    %v230 = vunpack.c.l.b16 %v69
    %v231 = vunpack.c.l.b16 %v70
    %v232 = vunpack.c.l.b16 %v71
    %v233 = vunpack.c.l.b16 %v72
    %v234 = vunpack.c.l.b16 %v73
    %v235 = vunpack.c.l.b16 %v74
    %v236 = vunpack.c.l.b16 %v75
    %v237 = vunpack.c.l.b16 %v76
    %v238 = vunpack.c.l.b16 %v77
    %v239 = vpack.c.b16 %v224, %v223
    %v240 = vpack.c.b16 %v226, %v225
    %v241 = vpack.c.b16 %v228, %v227
    %v242 = vpack.c.b16 %v230, %v229
    %v243 = vpack.c.b16 %v232, %v231
    %v244 = vpack.c.b16 %v234, %v233
    %v245 = vpack.c.b16 %v236, %v235
    %v246 = vpack.c.b16 %v238, %v237
    %255 = vmatprep.subr.bf16.mxu0 0
    %256 = vmatpush1.bf16.msra.mxu0 %v239
    %257 = vmatprep.subr.bf16.mxu0 0
    %258 = vmatpush1.bf16.msra.mxu0 %v240
    %259 = vmatprep.subr.bf16.mxu0 0
    %260 = vmatpush1.bf16.msra.mxu0 %v241
    %261 = vmatprep.subr.bf16.mxu0 0
    %262 = vmatpush1.bf16.msra.mxu0 %v242
    %263 = vmatprep.subr.bf16.mxu0 0
    %264 = vmatpush1.bf16.msra.mxu0 %v243
    %265 = vmatprep.subr.bf16.mxu0 0
    %266 = vmatpush1.bf16.msra.mxu0 %v244
    %267 = vmatprep.subr.bf16.mxu0 0
    %268 = vmatpush1.bf16.msra.mxu0 %v245
    %269 = vmatprep.subr.bf16.mxu0 0
    %270 = vmatpush1.bf16.msra.mxu0 %v246
    %271 = vmatprep.subr.bf16.mxu0 0
    %272 = vmatpush1.bf16.msra.mxu0 0
    %273 = vmatprep.subr.bf16.mxu0 0
    %274 = vmatpush1.bf16.msra.mxu0 0
    %275 = vmatprep.subr.bf16.mxu0 0
    %276 = vmatpush1.bf16.msra.mxu0 0
    %277 = vmatprep.subr.bf16.mxu0 0
    %278 = vmatpush1.bf16.msra.mxu0 0
    %279 = vmatprep.subr.bf16.mxu0 0
    %280 = vmatpush1.bf16.msra.mxu0 0
    %281 = vmatprep.subr.bf16.mxu0 0
    %282 = vmatpush1.bf16.msra.mxu0 0
    %283 = vmatprep.subr.bf16.mxu0 0
    %284 = vmatpush1.bf16.msra.mxu0 0
    %285 = vmatprep.subr.bf16.mxu0 0
    %286 = vmatpush1.bf16.msra.mxu0 0
    %287 = vmatprep.mubr.bf16.mxu0 0
    %288 = vmatmul.mubr.bf16.gmra.mrb[0].mxu0 %v206
    %v289 = vpop.f32.mrb[0].mxu0
    %v290 = vadd.f32 1e-05, %v289
    %v291 = vpop.f32.mrb[0].mxu0
    %v292 = vpop.f32.mrb[0].mxu0
    %v293 = vpop.f32.mrb[0].mxu0
    %294 = vdwg.mxu0
    %v295 = vrsqrt.pop %v290
    %v296 = vmul.f32 %v200, %v295
    %v297 = vld [vmem:[#allocation7 + $0x4] sm:$0x1]
    %v298 = vlaneseq
    %v299 = vshrl.u32 %v298, 7
    %v300 = vsub.s32 0, %v299
    %v301 = vrot.slane %v297, %v300
    %v302 = vmul.f32 %v296, %v301
    %v303 = vld [vmem:[#allocation7 + $0x7] sm:$0x1]
    %v304 = vlaneseq
    %v305 = vshrl.u32 %v304, 7
    %v306 = vsub.s32 0, %v305
    %v307 = vrot.slane %v303, %v306
    %v308 = vadd.f32 %v302, %v307
    %v309 = vld [vmem:[%s1] sm:$0x3]
    %s310 = scalar_lea.vmem [#allocation5], 64
    %v311 = vld [vmem:[%s310] sm:$0xf]
    %v312 = vld [vmem:[%s310 + $0x4] sm:$0xf]
    %v313 = vld [vmem:[%s310 + $0x8] sm:$0xf]
    %v314 = vld [vmem:[%s310 + $0xc] sm:$0xf]
    %v315 = vld [vmem:[%s310 + $0x10] sm:$0xf]
    %v316 = vld [vmem:[%s310 + $0x14] sm:$0xf]
    %v317 = vld [vmem:[%s310 + $0x18] sm:$0xf]
    %v318 = vld [vmem:[%s310 + $0x1c] sm:$0xf]
    %v319 = vld [vmem:[%s310 + $0x20] sm:$0xf]
    %v320 = vld [vmem:[%s310 + $0x24] sm:$0xf]
    %v321 = vld [vmem:[%s310 + $0x28] sm:$0xf]
    %v322 = vld [vmem:[%s310 + $0x2c] sm:$0xf]
    %v323 = vld [vmem:[%s310 + $0x30] sm:$0xf]
    %v324 = vld [vmem:[%s310 + $0x34] sm:$0xf]
    %v325 = vld [vmem:[%s310 + $0x38] sm:$0xf]
    %v326 = vld [vmem:[%s310 + $0x3c] sm:$0xf]
    %v327 = vld [vmem:[#allocation7 + $0x1] sm:$0x1]
    %v328 = vlaneseq
    %v329 = vshrl.u32 %v328, 7
    %v330 = vsub.s32 0, %v329
    %v331 = vrot.slane %v327, %v330
    %v348 = vunpack.c.l.b16 %v311
    %v349 = vunpack.c.l.b16 %v312
    %v350 = vunpack.c.l.b16 %v313
    %v351 = vunpack.c.l.b16 %v314
    %v352 = vunpack.c.l.b16 %v315
    %v353 = vunpack.c.l.b16 %v316
    %v354 = vunpack.c.l.b16 %v317
    %v355 = vunpack.c.l.b16 %v318
    %v356 = vunpack.c.l.b16 %v319
    %v357 = vunpack.c.l.b16 %v320
    %v358 = vunpack.c.l.b16 %v321
    %v359 = vunpack.c.l.b16 %v322
    %v360 = vunpack.c.l.b16 %v323
    %v361 = vunpack.c.l.b16 %v324
    %v362 = vunpack.c.l.b16 %v325
    %v363 = vunpack.c.l.b16 %v326
    %v364 = vpack.c.b16 %v349, %v348
    %v365 = vpack.c.b16 %v351, %v350
    %v366 = vpack.c.b16 %v353, %v352
    %v367 = vpack.c.b16 %v355, %v354
    %v368 = vpack.c.b16 %v357, %v356
    %v369 = vpack.c.b16 %v359, %v358
    %v370 = vpack.c.b16 %v361, %v360
    %v371 = vpack.c.b16 %v363, %v362
    %380 = vmatprep.subr.bf16.mxu0 0
    %381 = vmatpush1.bf16.msra.mxu0 %v364
    %382 = vmatprep.subr.bf16.mxu0 0
    %383 = vmatpush1.bf16.msra.mxu0 %v365
    %384 = vmatprep.subr.bf16.mxu0 0
    %385 = vmatpush1.bf16.msra.mxu0 %v366
    %386 = vmatprep.subr.bf16.mxu0 0
    %387 = vmatpush1.bf16.msra.mxu0 %v367
    %388 = vmatprep.subr.bf16.mxu0 0
    %389 = vmatpush1.bf16.msra.mxu0 %v368
    %390 = vmatprep.subr.bf16.mxu0 0
    %391 = vmatpush1.bf16.msra.mxu0 %v369
    %392 = vmatprep.subr.bf16.mxu0 0
    %393 = vmatpush1.bf16.msra.mxu0 %v370
    %394 = vmatprep.subr.bf16.mxu0 0
    %395 = vmatpush1.bf16.msra.mxu0 %v371
    %396 = vmatprep.subr.bf16.mxu0 0
    %397 = vmatpush1.bf16.msra.mxu0 0
    %398 = vmatprep.subr.bf16.mxu0 0
    %399 = vmatpush1.bf16.msra.mxu0 0
    %400 = vmatprep.subr.bf16.mxu0 0
    %401 = vmatpush1.bf16.msra.mxu0 0
    %402 = vmatprep.subr.bf16.mxu0 0
    %403 = vmatpush1.bf16.msra.mxu0 0
    %404 = vmatprep.subr.bf16.mxu0 0
    %405 = vmatpush1.bf16.msra.mxu0 0
    %406 = vmatprep.subr.bf16.mxu0 0
    %407 = vmatpush1.bf16.msra.mxu0 0
    %408 = vmatprep.subr.bf16.mxu0 0
    %409 = vmatpush1.bf16.msra.mxu0 0
    %410 = vmatprep.subr.bf16.mxu0 0
    %411 = vmatpush1.bf16.msra.mxu0 0
    %412 = vmatprep.mubr.bf16.mxu0 0
    %413 = vmatmul.mubr.bf16.gmra.mrb[0].mxu0 %v309
    %v414 = vpop.f32.mrb[0].mxu0
    %v415 = vadd.f32 %v331, %v414
    %v416 = vpop.f32.mrb[0].mxu0
    %v417 = vpop.f32.mrb[0].mxu0
    %v418 = vpop.f32.mrb[0].mxu0
    %419 = vdwg.mxu0
    %v420 = vmul.f32 %v415, %v415
    %v421 = vpack.c.bf16 %v420, %v420
    %422 = vmatprep.subr.bf16.mxu0 0
    %423 = vmatpush1.bf16.msra.mxu0 %v239
    %424 = vmatprep.subr.bf16.mxu0 0
    %425 = vmatpush1.bf16.msra.mxu0 %v240
    %426 = vmatprep.subr.bf16.mxu0 0
    %427 = vmatpush1.bf16.msra.mxu0 %v241
    %428 = vmatprep.subr.bf16.mxu0 0
    %429 = vmatpush1.bf16.msra.mxu0 %v242
    %430 = vmatprep.subr.bf16.mxu0 0
    %431 = vmatpush1.bf16.msra.mxu0 %v243
    %432 = vmatprep.subr.bf16.mxu0 0
    %433 = vmatpush1.bf16.msra.mxu0 %v244
    %434 = vmatprep.subr.bf16.mxu0 0
    %435 = vmatpush1.bf16.msra.mxu0 %v245
    %436 = vmatprep.subr.bf16.mxu0 0
    %437 = vmatpush1.bf16.msra.mxu0 %v246
    %438 = vmatprep.subr.bf16.mxu0 0
    %439 = vmatpush1.bf16.msra.mxu0 0
    %440 = vmatprep.subr.bf16.mxu0 0
    %441 = vmatpush1.bf16.msra.mxu0 0
    %442 = vmatprep.subr.bf16.mxu0 0
    %443 = vmatpush1.bf16.msra.mxu0 0
    %444 = vmatprep.subr.bf16.mxu0 0
    %445 = vmatpush1.bf16.msra.mxu0 0
    %446 = vmatprep.subr.bf16.mxu0 0
    %447 = vmatpush1.bf16.msra.mxu0 0
    %448 = vmatprep.subr.bf16.mxu0 0
    %449 = vmatpush1.bf16.msra.mxu0 0
    %450 = vmatprep.subr.bf16.mxu0 0
    %451 = vmatpush1.bf16.msra.mxu0 0
    %452 = vmatprep.subr.bf16.mxu0 0
    %453 = vmatpush1.bf16.msra.mxu0 0
    %454 = vmatprep.mubr.bf16.mxu0 0
    %455 = vmatmul.mubr.bf16.gmra.mrb[0].mxu0 %v421
    %v456 = vpop.f32.mrb[0].mxu0
    %v457 = vadd.f32 1e-05, %v456
    %v458 = vpop.f32.mrb[0].mxu0
    %v459 = vpop.f32.mrb[0].mxu0
    %v460 = vpop.f32.mrb[0].mxu0
    %461 = vdwg.mxu0
    %v462 = vrsqrt.pop %v457
    %v463 = vmul.f32 %v415, %v462
    %v464 = vld [vmem:[#allocation7 + $0x5] sm:$0x1]
    %v465 = vlaneseq
    %v466 = vshrl.u32 %v465, 7
    %v467 = vsub.s32 0, %v466
    %v468 = vrot.slane %v464, %v467
    %v469 = vmul.f32 %v463, %v468
    %v470 = vld [vmem:[#allocation7 + $0x8] sm:$0x1]
    %v471 = vlaneseq
    %v472 = vshrl.u32 %v471, 7
    %v473 = vsub.s32 0, %v472
    %v474 = vrot.slane %v470, %v473
    %v475 = vadd.f32 %v469, %v474
    %v476 = vld [vmem:[%s2] sm:$0x3]
    %s477 = scalar_lea.vmem [#allocation5], 128
    %v478 = vld [vmem:[%s477] sm:$0xf]
    %v479 = vld [vmem:[%s477 + $0x4] sm:$0xf]
    %v480 = vld [vmem:[%s477 + $0x8] sm:$0xf]
    %v481 = vld [vmem:[%s477 + $0xc] sm:$0xf]
    %v482 = vld [vmem:[%s477 + $0x10] sm:$0xf]
    %v483 = vld [vmem:[%s477 + $0x14] sm:$0xf]
    %v484 = vld [vmem:[%s477 + $0x18] sm:$0xf]
    %v485 = vld [vmem:[%s477 + $0x1c] sm:$0xf]
    %v486 = vld [vmem:[%s477 + $0x20] sm:$0xf]
    %v487 = vld [vmem:[%s477 + $0x24] sm:$0xf]
    %v488 = vld [vmem:[%s477 + $0x28] sm:$0xf]
    %v489 = vld [vmem:[%s477 + $0x2c] sm:$0xf]
    %v490 = vld [vmem:[%s477 + $0x30] sm:$0xf]
    %v491 = vld [vmem:[%s477 + $0x34] sm:$0xf]
    %v492 = vld [vmem:[%s477 + $0x38] sm:$0xf]
    %v493 = vld [vmem:[%s477 + $0x3c] sm:$0xf]
    %v494 = vld [vmem:[#allocation7 + $0x2] sm:$0x1]
    %v495 = vlaneseq
    %v496 = vshrl.u32 %v495, 7
    %v497 = vsub.s32 0, %v496
    %v498 = vrot.slane %v494, %v497
    %v515 = vunpack.c.l.b16 %v478
    %v516 = vunpack.c.l.b16 %v479
    %v517 = vunpack.c.l.b16 %v480
    %v518 = vunpack.c.l.b16 %v481
    %v519 = vunpack.c.l.b16 %v482
    %v520 = vunpack.c.l.b16 %v483
    %v521 = vunpack.c.l.b16 %v484
    %v522 = vunpack.c.l.b16 %v485
    %v523 = vunpack.c.l.b16 %v486
    %v524 = vunpack.c.l.b16 %v487
    %v525 = vunpack.c.l.b16 %v488
    %v526 = vunpack.c.l.b16 %v489
    %v527 = vunpack.c.l.b16 %v490
    %v528 = vunpack.c.l.b16 %v491
    %v529 = vunpack.c.l.b16 %v492
    %v530 = vunpack.c.l.b16 %v493
    %v531 = vpack.c.b16 %v516, %v515
    %v532 = vpack.c.b16 %v518, %v517
    %v533 = vpack.c.b16 %v520, %v519
    %v534 = vpack.c.b16 %v522, %v521
    %v535 = vpack.c.b16 %v524, %v523
    %v536 = vpack.c.b16 %v526, %v525
    %v537 = vpack.c.b16 %v528, %v527
    %v538 = vpack.c.b16 %v530, %v529
    %547 = vmatprep.subr.bf16.mxu0 0
    %548 = vmatpush1.bf16.msra.mxu0 %v531
    %549 = vmatprep.subr.bf16.mxu0 0
    %550 = vmatpush1.bf16.msra.mxu0 %v532
    %551 = vmatprep.subr.bf16.mxu0 0
    %552 = vmatpush1.bf16.msra.mxu0 %v533
    %553 = vmatprep.subr.bf16.mxu0 0
    %554 = vmatpush1.bf16.msra.mxu0 %v534
    %555 = vmatprep.subr.bf16.mxu0 0
    %556 = vmatpush1.bf16.msra.mxu0 %v535
    %557 = vmatprep.subr.bf16.mxu0 0
    %558 = vmatpush1.bf16.msra.mxu0 %v536
    %559 = vmatprep.subr.bf16.mxu0 0
    %560 = vmatpush1.bf16.msra.mxu0 %v537
    %561 = vmatprep.subr.bf16.mxu0 0
    %562 = vmatpush1.bf16.msra.mxu0 %v538
    %563 = vmatprep.subr.bf16.mxu0 0
    %564 = vmatpush1.bf16.msra.mxu0 0
    %565 = vmatprep.subr.bf16.mxu0 0
    %566 = vmatpush1.bf16.msra.mxu0 0
    %567 = vmatprep.subr.bf16.mxu0 0
    %568 = vmatpush1.bf16.msra.mxu0 0
    %569 = vmatprep.subr.bf16.mxu0 0
    %570 = vmatpush1.bf16.msra.mxu0 0
    %571 = vmatprep.subr.bf16.mxu0 0
    %572 = vmatpush1.bf16.msra.mxu0 0
    %573 = vmatprep.subr.bf16.mxu0 0
    %574 = vmatpush1.bf16.msra.mxu0 0
    %575 = vmatprep.subr.bf16.mxu0 0
    %576 = vmatpush1.bf16.msra.mxu0 0
    %577 = vmatprep.subr.bf16.mxu0 0
    %578 = vmatpush1.bf16.msra.mxu0 0
    %579 = vmatprep.mubr.bf16.mxu0 0
    %580 = vmatmul.mubr.bf16.gmra.mrb[0].mxu0 %v476
    %v581 = vpop.f32.mrb[0].mxu0
    %v582 = vadd.f32 %v498, %v581
    %v583 = vpop.f32.mrb[0].mxu0
    %v584 = vpop.f32.mrb[0].mxu0
    %v585 = vpop.f32.mrb[0].mxu0
    %586 = vdwg.mxu0
    %v587 = vmul.f32 %v582, %v582
    %v588 = vpack.c.bf16 %v587, %v587
    %589 = vmatprep.subr.bf16.mxu0 0
    %590 = vmatpush1.bf16.msra.mxu0 %v239
    %591 = vmatprep.subr.bf16.mxu0 0
    %592 = vmatpush1.bf16.msra.mxu0 %v240
    %593 = vmatprep.subr.bf16.mxu0 0
    %594 = vmatpush1.bf16.msra.mxu0 %v241
    %595 = vmatprep.subr.bf16.mxu0 0
    %596 = vmatpush1.bf16.msra.mxu0 %v242
    %597 = vmatprep.subr.bf16.mxu0 0
    %598 = vmatpush1.bf16.msra.mxu0 %v243
    %599 = vmatprep.subr.bf16.mxu0 0
    %600 = vmatpush1.bf16.msra.mxu0 %v244
    %601 = vmatprep.subr.bf16.mxu0 0
    %602 = vmatpush1.bf16.msra.mxu0 %v245
    %603 = vmatprep.subr.bf16.mxu0 0
    %604 = vmatpush1.bf16.msra.mxu0 %v246
    %605 = vmatprep.subr.bf16.mxu0 0
    %606 = vmatpush1.bf16.msra.mxu0 0
    %607 = vmatprep.subr.bf16.mxu0 0
    %608 = vmatpush1.bf16.msra.mxu0 0
    %609 = vmatprep.subr.bf16.mxu0 0
    %610 = vmatpush1.bf16.msra.mxu0 0
    %611 = vmatprep.subr.bf16.mxu0 0
    %612 = vmatpush1.bf16.msra.mxu0 0
    %613 = vmatprep.subr.bf16.mxu0 0
    %614 = vmatpush1.bf16.msra.mxu0 0
    %615 = vmatprep.subr.bf16.mxu0 0
    %616 = vmatpush1.bf16.msra.mxu0 0
    %617 = vmatprep.subr.bf16.mxu0 0
    %618 = vmatpush1.bf16.msra.mxu0 0
    %619 = vmatprep.subr.bf16.mxu0 0
    %620 = vmatpush1.bf16.msra.mxu0 0
    %621 = vmatprep.mubr.bf16.mxu0 0
    %622 = vmatmul.mubr.bf16.gmra.mrb[0].mxu0 %v588
    %v623 = vpop.f32.mrb[0].mxu0
    %v624 = vadd.f32 1e-05, %v623
    %v625 = vpop.f32.mrb[0].mxu0
    %v626 = vpop.f32.mrb[0].mxu0
    %v627 = vpop.f32.mrb[0].mxu0
    %628 = vdwg.mxu0
    %v629 = vrsqrt.pop %v624
    %v630 = vmul.f32 %v582, %v629
    %v631 = vld [vmem:[#allocation7 + $0x6] sm:$0x1]
    %v632 = vlaneseq
    %v633 = vshrl.u32 %v632, 7
    %v634 = vsub.s32 0, %v633
    %v635 = vrot.slane %v631, %v634
    %v636 = vmul.f32 %v630, %v635
    %v637 = vld [vmem:[#allocation7 + $0x9] sm:$0x1]
    %v638 = vlaneseq
    %v639 = vshrl.u32 %v638, 7
    %v640 = vsub.s32 0, %v639
    %v641 = vrot.slane %v637, %v640
    %v642 = vadd.f32 %v636, %v641
    %v643 = vlaneseq
    %v644 = vand.u32 %v643, 127
    %vm645 = vcmp.lt.s32.totalorder %v644, 0
    %v646 = vsub.s32 0, %v644
    %v647 = vsel %vm645, %v646, %v644
    %v648 = vshrl.u32 %v647, 5
    %v649 = vand.u32 %v647, 31
    %v650 = vsub.s32 0, %v649
    %v651 = vsel %vm645, %v650, %v649
    %vm652 = vcmp.ne.s32.totalorder %v651, 0
    %vm653 = vcmp.lt.s32.totalorder %v651, 0
    %vm654 = vmand %vm653, %vm652
    %v655 = vadd.s32 %v651, 32
    %v656 = vsel %vm654, %v655, %v651
    %vm657 = vcmp.lt.s32.totalorder %v656, 24
    %vm658 = vcmp.lt.s32.totalorder %v656, 16
    %vm659 = vcmp.lt.s32.totalorder %v656, 8
    %v660 = vmul.f32 %v308, %v475
    %v661 = vpack.c.bf16 %v660, %v660
    %v678 = vunpack.c.l.b16 %v79
    %v679 = vunpack.c.l.b16 %v80
    %v680 = vunpack.c.l.b16 %v81
    %v681 = vunpack.c.l.b16 %v82
    %v682 = vunpack.c.l.b16 %v83
    %v683 = vunpack.c.l.b16 %v84
    %v684 = vunpack.c.l.b16 %v85
    %v685 = vunpack.c.l.b16 %v86
    %v686 = vunpack.c.l.b16 %v87
    %v687 = vunpack.c.l.b16 %v88
    %v688 = vunpack.c.l.b16 %v89
    %v689 = vunpack.c.l.b16 %v90
    %v690 = vunpack.c.l.b16 %v91
    %v691 = vunpack.c.l.b16 %v92
    %v692 = vunpack.c.l.b16 %v93
    %v693 = vunpack.c.l.b16 %v94
    %v694 = vpack.c.b16 %v679, %v678
    %v695 = vpack.c.b16 %v681, %v680
    %v696 = vpack.c.b16 %v683, %v682
    %v697 = vpack.c.b16 %v685, %v684
    %v698 = vpack.c.b16 %v687, %v686
    %v699 = vpack.c.b16 %v689, %v688
    %v700 = vpack.c.b16 %v691, %v690
    %v701 = vpack.c.b16 %v693, %v692
    %710 = vmatprep.subr.bf16.mxu0 0
    %711 = vmatpush1.bf16.msra.mxu0 %v694
    %712 = vmatprep.subr.bf16.mxu0 0
    %713 = vmatpush1.bf16.msra.mxu0 %v695
    %714 = vmatprep.subr.bf16.mxu0 0
    %715 = vmatpush1.bf16.msra.mxu0 %v696
    %716 = vmatprep.subr.bf16.mxu0 0
    %717 = vmatpush1.bf16.msra.mxu0 %v697
    %718 = vmatprep.subr.bf16.mxu0 0
    %719 = vmatpush1.bf16.msra.mxu0 %v698
    %720 = vmatprep.subr.bf16.mxu0 0
    %721 = vmatpush1.bf16.msra.mxu0 %v699
    %722 = vmatprep.subr.bf16.mxu0 0
    %723 = vmatpush1.bf16.msra.mxu0 %v700
    %724 = vmatprep.subr.bf16.mxu0 0
    %725 = vmatpush1.bf16.msra.mxu0 %v701
    %726 = vmatprep.subr.bf16.mxu0 0
    %727 = vmatpush1.bf16.msra.mxu0 0
    %728 = vmatprep.subr.bf16.mxu0 0
    %729 = vmatpush1.bf16.msra.mxu0 0
    %730 = vmatprep.subr.bf16.mxu0 0
    %731 = vmatpush1.bf16.msra.mxu0 0
    %732 = vmatprep.subr.bf16.mxu0 0
    %733 = vmatpush1.bf16.msra.mxu0 0
    %734 = vmatprep.subr.bf16.mxu0 0
    %735 = vmatpush1.bf16.msra.mxu0 0
    %736 = vmatprep.subr.bf16.mxu0 0
    %737 = vmatpush1.bf16.msra.mxu0 0
    %738 = vmatprep.subr.bf16.mxu0 0
    %739 = vmatpush1.bf16.msra.mxu0 0
    %740 = vmatprep.subr.bf16.mxu0 0
    %741 = vmatpush1.bf16.msra.mxu0 0
    %742 = vmatprep.mubr.bf16.mxu0 0
    %743 = vmatmul.mubr.bf16.gmra.mrb[0].mxu0 %v661
    %v744 = vpop.f32.mrb[0].mxu0
    %v745 = vadd.f32 0.0, %v744
    %v746 = vpop.f32.mrb[0].mxu0
    %v747 = vpop.f32.mrb[0].mxu0
    %v748 = vpop.f32.mrb[0].mxu0
    %749 = vdwg.mxu0
    %750 = vrot.lane.b32.xlu0 %v475, 120
    %v751 = vpop.permute.xlu0 %750
    %752 = vrot.lane.b32.xlu0 %v475, 24
    %v753 = vpop.permute.xlu0 %752
    %v754 = vsel %vm657, %v751, %v753
    %v755 = vmul.f32 %v308, %v754
    %v756 = vpack.c.bf16 %v755, %v755
    %757 = vmatprep.subr.bf16.mxu0 0
    %758 = vmatpush1.bf16.msra.mxu0 %v694
    %759 = vmatprep.subr.bf16.mxu0 0
    %760 = vmatpush1.bf16.msra.mxu0 %v695
    %761 = vmatprep.subr.bf16.mxu0 0
    %762 = vmatpush1.bf16.msra.mxu0 %v696
    %763 = vmatprep.subr.bf16.mxu0 0
    %764 = vmatpush1.bf16.msra.mxu0 %v697
    %765 = vmatprep.subr.bf16.mxu0 0
    %766 = vmatpush1.bf16.msra.mxu0 %v698
    %767 = vmatprep.subr.bf16.mxu0 0
    %768 = vmatpush1.bf16.msra.mxu0 %v699
    %769 = vmatprep.subr.bf16.mxu0 0
    %770 = vmatpush1.bf16.msra.mxu0 %v700
    %771 = vmatprep.subr.bf16.mxu0 0
    %772 = vmatpush1.bf16.msra.mxu0 %v701
    %773 = vmatprep.subr.bf16.mxu0 0
    %774 = vmatpush1.bf16.msra.mxu0 0
    %775 = vmatprep.subr.bf16.mxu0 0
    %776 = vmatpush1.bf16.msra.mxu0 0
    %777 = vmatprep.subr.bf16.mxu0 0
    %778 = vmatpush1.bf16.msra.mxu0 0
    %779 = vmatprep.subr.bf16.mxu0 0
    %780 = vmatpush1.bf16.msra.mxu0 0
    %781 = vmatprep.subr.bf16.mxu0 0
    %782 = vmatpush1.bf16.msra.mxu0 0
    %783 = vmatprep.subr.bf16.mxu0 0
    %784 = vmatpush1.bf16.msra.mxu0 0
    %785 = vmatprep.subr.bf16.mxu0 0
    %786 = vmatpush1.bf16.msra.mxu0 0
    %787 = vmatprep.subr.bf16.mxu0 0
    %788 = vmatpush1.bf16.msra.mxu0 0
    %789 = vmatprep.mubr.bf16.mxu0 0
    %790 = vmatmul.mubr.bf16.gmra.mrb[0].mxu0 %v756
    %v791 = vpop.f32.mrb[0].mxu0
    %v792 = vadd.f32 0.0, %v791
    %v793 = vpop.f32.mrb[0].mxu0
    %v794 = vpop.f32.mrb[0].mxu0
    %v795 = vpop.f32.mrb[0].mxu0
    %796 = vdwg.mxu0
    %797 = vrot.lane.b32.xlu0 %v475, 112
    %v798 = vpop.permute.xlu0 %797
    %799 = vrot.lane.b32.xlu0 %v475, 16
    %v800 = vpop.permute.xlu0 %799
    %v801 = vsel %vm658, %v798, %v800
    %v802 = vmul.f32 %v308, %v801
    %v803 = vpack.c.bf16 %v802, %v802
    %804 = vmatprep.subr.bf16.mxu0 0
    %805 = vmatpush1.bf16.msra.mxu0 %v694
    %806 = vmatprep.subr.bf16.mxu0 0
    %807 = vmatpush1.bf16.msra.mxu0 %v695
    %808 = vmatprep.subr.bf16.mxu0 0
    %809 = vmatpush1.bf16.msra.mxu0 %v696
    %810 = vmatprep.subr.bf16.mxu0 0
    %811 = vmatpush1.bf16.msra.mxu0 %v697
    %812 = vmatprep.subr.bf16.mxu0 0
    %813 = vmatpush1.bf16.msra.mxu0 %v698
    %814 = vmatprep.subr.bf16.mxu0 0
    %815 = vmatpush1.bf16.msra.mxu0 %v699
    %816 = vmatprep.subr.bf16.mxu0 0
    %817 = vmatpush1.bf16.msra.mxu0 %v700
    %818 = vmatprep.subr.bf16.mxu0 0
    %819 = vmatpush1.bf16.msra.mxu0 %v701
    %820 = vmatprep.subr.bf16.mxu0 0
    %821 = vmatpush1.bf16.msra.mxu0 0
    %822 = vmatprep.subr.bf16.mxu0 0
    %823 = vmatpush1.bf16.msra.mxu0 0
    %824 = vmatprep.subr.bf16.mxu0 0
    %825 = vmatpush1.bf16.msra.mxu0 0
    %826 = vmatprep.subr.bf16.mxu0 0
    %827 = vmatpush1.bf16.msra.mxu0 0
    %828 = vmatprep.subr.bf16.mxu0 0
    %829 = vmatpush1.bf16.msra.mxu0 0
    %830 = vmatprep.subr.bf16.mxu0 0
    %831 = vmatpush1.bf16.msra.mxu0 0
    %832 = vmatprep.subr.bf16.mxu0 0
    %833 = vmatpush1.bf16.msra.mxu0 0
    %834 = vmatprep.subr.bf16.mxu0 0
    %835 = vmatpush1.bf16.msra.mxu0 0
    %836 = vmatprep.mubr.bf16.mxu0 0
    %837 = vmatmul.mubr.bf16.gmra.mrb[0].mxu0 %v803
    %v838 = vpop.f32.mrb[0].mxu0
    %v839 = vadd.f32 0.0, %v838
    %v840 = vpop.f32.mrb[0].mxu0
    %v841 = vpop.f32.mrb[0].mxu0
    %v842 = vpop.f32.mrb[0].mxu0
    %843 = vdwg.mxu0
    %844 = vrot.lane.b32.xlu0 %v475, 104
    %v845 = vpop.permute.xlu0 %844
    %846 = vrot.lane.b32.xlu0 %v475, 8
    %v847 = vpop.permute.xlu0 %846
    %v848 = vsel %vm659, %v845, %v847
    %v849 = vmul.f32 %v308, %v848
    %v850 = vpack.c.bf16 %v849, %v849
    %851 = vmatprep.subr.bf16.mxu0 0
    %852 = vmatpush1.bf16.msra.mxu0 %v694
    %853 = vmatprep.subr.bf16.mxu0 0
    %854 = vmatpush1.bf16.msra.mxu0 %v695
    %855 = vmatprep.subr.bf16.mxu0 0
    %856 = vmatpush1.bf16.msra.mxu0 %v696
    %857 = vmatprep.subr.bf16.mxu0 0
    %858 = vmatpush1.bf16.msra.mxu0 %v697
    %859 = vmatprep.subr.bf16.mxu0 0
    %860 = vmatpush1.bf16.msra.mxu0 %v698
    %861 = vmatprep.subr.bf16.mxu0 0
    %862 = vmatpush1.bf16.msra.mxu0 %v699
    %863 = vmatprep.subr.bf16.mxu0 0
    %864 = vmatpush1.bf16.msra.mxu0 %v700
    %865 = vmatprep.subr.bf16.mxu0 0
    %866 = vmatpush1.bf16.msra.mxu0 %v701
    %867 = vmatprep.subr.bf16.mxu0 0
    %868 = vmatpush1.bf16.msra.mxu0 0
    %869 = vmatprep.subr.bf16.mxu0 0
    %870 = vmatpush1.bf16.msra.mxu0 0
    %871 = vmatprep.subr.bf16.mxu0 0
    %872 = vmatpush1.bf16.msra.mxu0 0
    %873 = vmatprep.subr.bf16.mxu0 0
    %874 = vmatpush1.bf16.msra.mxu0 0
    %875 = vmatprep.subr.bf16.mxu0 0
    %876 = vmatpush1.bf16.msra.mxu0 0
    %877 = vmatprep.subr.bf16.mxu0 0
    %878 = vmatpush1.bf16.msra.mxu0 0
    %879 = vmatprep.subr.bf16.mxu0 0
    %880 = vmatpush1.bf16.msra.mxu0 0
    %881 = vmatprep.subr.bf16.mxu0 0
    %882 = vmatpush1.bf16.msra.mxu0 0
    %883 = vmatprep.mubr.bf16.mxu0 0
    %884 = vmatmul.mubr.bf16.gmra.mrb[0].mxu0 %v850
    %v885 = vpop.f32.mrb[0].mxu0
    %v886 = vadd.f32 0.0, %v885
    %v887 = vpop.f32.mrb[0].mxu0
    %v888 = vpop.f32.mrb[0].mxu0
    %v889 = vpop.f32.mrb[0].mxu0
    %890 = vdwg.mxu0
    %v891 = vmax.f32 %v745, %v792
    %v892 = vmax.f32 %v891, %v839
    %v893 = vmax.f32 %v892, %v886
    %v894 = vsub.f32 %v745, %v893
    %v895 = vmul.f32 %v894, 1.442695
    %v896 = vpow.pop %v895
    %v897 = vmul.f32 %v896, %v642
    %v898 = vsub.f32 %v792, %v893
    %v899 = vmul.f32 %v898, 1.442695
    %v900 = vpow.pop %v899
    %901 = vrot.lane.b32.xlu0 %v642, 120
    %v902 = vpop.permute.xlu0 %901
    %903 = vrot.lane.b32.xlu0 %v642, 24
    %v904 = vpop.permute.xlu0 %903
    %v905 = vsel %vm657, %v902, %v904
    %v906 = vadd.f32 %v896, %v900
    %v907 = vmul.f32 %v900, %v905
    %v908 = vadd.f32 %v897, %v907
    %v909 = vsub.f32 %v839, %v893
    %v910 = vmul.f32 %v909, 1.442695
    %v911 = vpow.pop %v910
    %912 = vrot.lane.b32.xlu0 %v642, 112
    %v913 = vpop.permute.xlu0 %912
    %914 = vrot.lane.b32.xlu0 %v642, 16
    %v915 = vpop.permute.xlu0 %914
    %v916 = vsel %vm658, %v913, %v915
    %v917 = vadd.f32 %v906, %v911
    %v918 = vmul.f32 %v911, %v916
    %v919 = vadd.f32 %v908, %v918
    %v920 = vsub.f32 %v886, %v893
    %v921 = vmul.f32 %v920, 1.442695
    %v922 = vpow.pop %v921
    %923 = vrot.lane.b32.xlu0 %v642, 104
    %v924 = vpop.permute.xlu0 %923
    %925 = vrot.lane.b32.xlu0 %v642, 8
    %v926 = vpop.permute.xlu0 %925
    %v927 = vsel %vm659, %v924, %v926
    %v928 = vadd.f32 %v917, %v922
    %v929 = vmul.f32 %v922, %v927
    %v930 = vadd.f32 %v919, %v929
    %v931 = vrcp.pop %v928
    %v932 = vmul.f32 %v930, %v931
    %v933 = vpack.c.bf16 %v932, %v932
    %s934 = scalar_lea.vmem [#allocation5], 192
    %v935 = vld [vmem:[%s934] sm:$0xf]
    %v936 = vld [vmem:[%s934 + $0x4] sm:$0xf]
    %v937 = vld [vmem:[%s934 + $0x8] sm:$0xf]
    %v938 = vld [vmem:[%s934 + $0xc] sm:$0xf]
    %v939 = vld [vmem:[%s934 + $0x10] sm:$0xf]
    %v940 = vld [vmem:[%s934 + $0x14] sm:$0xf]
    %v941 = vld [vmem:[%s934 + $0x18] sm:$0xf]
    %v942 = vld [vmem:[%s934 + $0x1c] sm:$0xf]
    %v943 = vld [vmem:[%s934 + $0x20] sm:$0xf]
    %v944 = vld [vmem:[%s934 + $0x24] sm:$0xf]
    %v945 = vld [vmem:[%s934 + $0x28] sm:$0xf]
    %v946 = vld [vmem:[%s934 + $0x2c] sm:$0xf]
    %v947 = vld [vmem:[%s934 + $0x30] sm:$0xf]
    %v948 = vld [vmem:[%s934 + $0x34] sm:$0xf]
    %v949 = vld [vmem:[%s934 + $0x38] sm:$0xf]
    %v950 = vld [vmem:[%s934 + $0x3c] sm:$0xf]
    %v951 = vld [vmem:[#allocation7 + $0x3] sm:$0x1]
    %v952 = vlaneseq
    %v953 = vshrl.u32 %v952, 7
    %v954 = vsub.s32 0, %v953
    %v955 = vrot.slane %v951, %v954
    %v972 = vunpack.c.l.b16 %v935
    %v973 = vunpack.c.l.b16 %v936
    %v974 = vunpack.c.l.b16 %v937
    %v975 = vunpack.c.l.b16 %v938
    %v976 = vunpack.c.l.b16 %v939
    %v977 = vunpack.c.l.b16 %v940
    %v978 = vunpack.c.l.b16 %v941
    %v979 = vunpack.c.l.b16 %v942
    %v980 = vunpack.c.l.b16 %v943
    %v981 = vunpack.c.l.b16 %v944
    %v982 = vunpack.c.l.b16 %v945
    %v983 = vunpack.c.l.b16 %v946
    %v984 = vunpack.c.l.b16 %v947
    %v985 = vunpack.c.l.b16 %v948
    %v986 = vunpack.c.l.b16 %v949
    %v987 = vunpack.c.l.b16 %v950
    %v988 = vpack.c.b16 %v973, %v972
    %v989 = vpack.c.b16 %v975, %v974
    %v990 = vpack.c.b16 %v977, %v976
    %v991 = vpack.c.b16 %v979, %v978
    %v992 = vpack.c.b16 %v981, %v980
    %v993 = vpack.c.b16 %v983, %v982
    %v994 = vpack.c.b16 %v985, %v984
    %v995 = vpack.c.b16 %v987, %v986
    %1004 = vmatprep.subr.bf16.mxu0 0
    %1005 = vmatpush1.bf16.msra.mxu0 %v988
    %1006 = vmatprep.subr.bf16.mxu0 0
    %1007 = vmatpush1.bf16.msra.mxu0 %v989
    %1008 = vmatprep.subr.bf16.mxu0 0
    %1009 = vmatpush1.bf16.msra.mxu0 %v990
    %1010 = vmatprep.subr.bf16.mxu0 0
    %1011 = vmatpush1.bf16.msra.mxu0 %v991
    %1012 = vmatprep.subr.bf16.mxu0 0
    %1013 = vmatpush1.bf16.msra.mxu0 %v992
    %1014 = vmatprep.subr.bf16.mxu0 0
    %1015 = vmatpush1.bf16.msra.mxu0 %v993
    %1016 = vmatprep.subr.bf16.mxu0 0
    %1017 = vmatpush1.bf16.msra.mxu0 %v994
    %1018 = vmatprep.subr.bf16.mxu0 0
    %1019 = vmatpush1.bf16.msra.mxu0 %v995
    %1020 = vmatprep.subr.bf16.mxu0 0
    %1021 = vmatpush1.bf16.msra.mxu0 0
    %1022 = vmatprep.subr.bf16.mxu0 0
    %1023 = vmatpush1.bf16.msra.mxu0 0
    %1024 = vmatprep.subr.bf16.mxu0 0
    %1025 = vmatpush1.bf16.msra.mxu0 0
    %1026 = vmatprep.subr.bf16.mxu0 0
    %1027 = vmatpush1.bf16.msra.mxu0 0
    %1028 = vmatprep.subr.bf16.mxu0 0
    %1029 = vmatpush1.bf16.msra.mxu0 0
    %1030 = vmatprep.subr.bf16.mxu0 0
    %1031 = vmatpush1.bf16.msra.mxu0 0
    %1032 = vmatprep.subr.bf16.mxu0 0
    %1033 = vmatpush1.bf16.msra.mxu0 0
    %1034 = vmatprep.subr.bf16.mxu0 0
    %1035 = vmatpush1.bf16.msra.mxu0 0
    %1036 = vmatprep.mubr.bf16.mxu0 0
    %1037 = vmatmul.mubr.bf16.gmra.mrb[0].mxu0 %v933
    %v1038 = vpop.f32.mrb[0].mxu0
    %v1039 = vadd.f32 %v955, %v1038
    %v1040 = vpop.f32.mrb[0].mxu0
    %v1041 = vpop.f32.mrb[0].mxu0
    %v1042 = vpop.f32.mrb[0].mxu0
    %1043 = vdwg.mxu0
    %1044 = vst [vmem:[#allocation8] sm:$0xf] %v1039
    // Predicated region
    $region34: #{tpu_custom_call.1} parent=1 // pred_check
      _
    $region35: #{tpu_custom_call.1} parent=1 // pred_check_branch
      %1046 = sbr.rel (0) target = $region37
    $region36: #{tpu_custom_call.1} parent=1 // pred_region
      %s1048 = ssub.s32 64, 64
      %1049 = vsyncadd [#allocation4], %s1048
      %s1051 = sshll.u32 [#allocation8], 4
      %s1052 = int_to_ptr.vmem [resolvable:$true] %s1051
      %1054 = dma.vmem_to_hbm [thread:$0]  %s1052, 64, %s5, [#allocation4]
    $region37: #{tpu_custom_call.1} parent=1 // pred_fallthru
      _
    // Predicated region
    $region38: #{tpu_custom_call.1} parent=1 // pred_check
      _
    $region39: #{tpu_custom_call.1} parent=1 // pred_check_branch
      %1056 = sbr.rel (0) target = $region41
    $region40: #{tpu_custom_call.1} parent=1 // pred_region
      %1057 = dma.done [#allocation4], 64
    $region41: #{tpu_custom_call.1} parent=1 // pred_fallthru
      _
    %1058 = vsyncpa [#allocation3], 1
    %1059 = vsyncpa [#allocation6], 1
    %1060 = vsyncpa [#allocation4], 1

</llo_original>
